<compile_context>
chip_gen: v7x
topology: tpu7x:2x2x1
jax: 0.10.0
libtpu: 0.0.40
codegen_flags: <defaults>
</compile_context>

<pallas_src>
import functools

import jax
import jax.numpy as jnp
from jax.experimental import pallas as pl
from jax.experimental.pallas import tpu as pltpu


def _round_up(n, m):
    return ((n + m - 1) // m) * m


def _softplus(x):
    # Matches torch.nn.Softplus (beta=1, threshold=20): linear above threshold.
    return jnp.where(x > 20.0, x, jnp.log1p(jnp.exp(jnp.minimum(x, 20.0))))


def _encoder_kernel(x_ref, w1_ref, b1_ref, wcat_ref, bcat_ref, out_ref, *, z_dim):
    # Layer 1: bf16 MXU operands, f32 accumulation, f32 epilogue.
    x = x_ref[...].astype(jnp.bfloat16)                       # (TB, D)
    h_pre = jnp.dot(x, w1_ref[...],
                    preferred_element_type=jnp.float32) + b1_ref[...]
    hidden = _softplus(h_pre)                                 # (TB, H) f32

    # Fused head: one matmul producing [z_loc_pre || z_scale_pre] (TB, 2Z).
    z = jnp.dot(hidden.astype(jnp.bfloat16), wcat_ref[...],
                preferred_element_type=jnp.float32) + bcat_ref[...]

    # exp() only on the z_scale half; mask avoids cross-lane slice/concat.
    col = jax.lax.broadcasted_iota(jnp.int32, z.shape, 1)
    out_ref[...] = jnp.where(col < z_dim, z, jnp.exp(z))


def encoder_forward(x, params, *, batch_tile=512):
    """x: any shape whose trailing dims flatten to input_dim (e.g. NCHW)."""
    w1, b1, w21, b21, w22, b22 = params
    input_dim, hidden_dim = w1.shape
    z_dim = w21.shape[1]

    # torch's x.reshape(-1, input_dim); reshape only, no dtype copy on host.
    x2d = x.reshape(-1, input_dim)
    batch = x2d.shape[0]

    # bf16 MXU operands for the weights; biases stay f32 (f32 epilogue).
    w1_bf = w1.astype(jnp.bfloat16)                                    # (D, H)
    w_cat = jnp.concatenate([w21, w22], axis=1).astype(jnp.bfloat16)   # (H, 2Z)
    b1_f = b1.astype(jnp.float32)                                      # (1, H)
    b_cat = jnp.concatenate([b21, b22], axis=1).astype(jnp.float32)    # (1, 2Z)

    # Batch tiling: small batches -> one sublane-aligned tile; big batches ->
    # TB=batch_tile rows per grid step. Pad ragged batch, slice back after.
    tb = min(batch_tile, _round_up(batch, 8))
    padded = _round_up(batch, tb)
    if padded != batch:
        x2d = jnp.pad(x2d, ((0, padded - batch), (0, 0)))
    grid = (padded // tb,)

    kernel = functools.partial(_encoder_kernel, z_dim=z_dim)

    cost = pl.CostEstimate(
        flops=2 * padded * (input_dim * hidden_dim + hidden_dim * 2 * z_dim),
        transcendentals=padded * (hidden_dim + z_dim),
        bytes_accessed=(x2d.size * x2d.dtype.itemsize
                        + w1_bf.size * 2 + w_cat.size * 2
                        + padded * 2 * z_dim * 4),
    )

    z_cat = pl.pallas_call(
        kernel,
        out_shape=jax.ShapeDtypeStruct((padded, 2 * z_dim), jnp.float32),
        grid_spec=pltpu.PrefetchScalarGridSpec(
            num_scalar_prefetch=0,
            grid=grid,
            in_specs=[
                pl.BlockSpec((tb, input_dim), lambda i: (i, 0)),           # x
                pl.BlockSpec((input_dim, hidden_dim), lambda i: (0, 0)),   # W1
                pl.BlockSpec((1, hidden_dim), lambda i: (0, 0)),           # b1
                pl.BlockSpec((hidden_dim, 2 * z_dim), lambda i: (0, 0)),   # Wcat
                pl.BlockSpec((1, 2 * z_dim), lambda i: (0, 0)),            # bcat
            ],
            out_specs=pl.BlockSpec((tb, 2 * z_dim), lambda i: (i, 0)),
        ),
        compiler_params=pltpu.CompilerParams(
            dimension_semantics=("parallel",)),
        cost_estimate=cost,
    )(x2d, w1_bf, b1_f, w_cat, b_cat)

    z_loc = z_cat[:batch, :z_dim]
    z_scale = z_cat[:batch, z_dim:]
    return z_loc, z_scale


def init_encoder_params(key, input_dim, z_dim, hidden_dim):
    """Deterministic init mirroring nn.Linear shapes (stored transposed)."""
    k1, k2, k3, k4, k5, k6 = jax.random.split(key, 6)

    def linear(kw, kb, fan_in, fan_out):
        bound = 1.0 / jnp.sqrt(fan_in)
        w = jax.random.uniform(kw, (fan_in, fan_out), jnp.float32, -bound, bound)
        b = jax.random.uniform(kb, (1, fan_out), jnp.float32, -bound, bound)
        return w, b

    w1, b1 = linear(k1, k2, input_dim, hidden_dim)
    w21, b21 = linear(k3, k4, hidden_dim, z_dim)
    w22, b22 = linear(k5, k6, hidden_dim, z_dim)
    return (w1, b1, w21, b21, w22, b22)


if __name__ == "__main__":
    key = jax.random.PRNGKey(0)
    kx, kp = jax.random.split(key)

    # Small shapes: NCHW input (2, 4, 16, 16) -> input_dim = 4*16*16 = 1024
    B, C, H, W = 2, 4, 16, 16
    input_dim = C * H * W
    hidden_dim = 128
    z_dim = 32

    x = jax.random.normal(kx, (B, C, H, W), jnp.float32)
    params = init_encoder_params(kp, input_dim, z_dim, hidden_dim)

    z_loc, z_scale = encoder_forward(x, params)
    jax.block_until_ready((z_loc, z_scale))

    # Sanity check against a pure-f32 JAX reference of the same math.
    # (Kernel feeds the MXU bf16 operands with f32 accumulation, hence the
    # bf16-level tolerance.)
    x2d = x.reshape(-1, input_dim)
    w1, b1, w21, b21, w22, b22 = params
    hidden_ref = jax.nn.softplus(x2d @ w1 + b1)
    zloc_ref = hidden_ref @ w21 + b21
    zscale_ref = jnp.exp(hidden_ref @ w22 + b22)
    assert z_loc.shape == (B, z_dim) and z_scale.shape == (B, z_dim)
    assert jnp.allclose(z_loc, zloc_ref, atol=2e-2, rtol=2e-2)
    assert jnp.allclose(z_scale, zscale_ref, atol=2e-2, rtol=2e-2)

    print("KERNEL_OK")
</pallas_src>

<mosaic_0001>
module attributes {stable_mosaic.version = 11 : i64} {
  func.func @_encoder_kernel(%arg0: i32, %arg1: memref<8x1024xf32, #tpu.memory_space<vmem>>, %arg2: memref<1024x128xbf16, #tpu.memory_space<vmem>>, %arg3: memref<1x128xf32, #tpu.memory_space<vmem>>, %arg4: memref<128x64xbf16, #tpu.memory_space<vmem>>, %arg5: memref<1x64xf32, #tpu.memory_space<vmem>>, %arg6: memref<8x64xf32, #tpu.memory_space<vmem>>) attributes {dimension_semantics = [#tpu.dimension_semantics<parallel>], iteration_bounds = array<i64: 1>, scalar_prefetch = 0 : i64, scratch_operands = 0 : i64, tpu.core_type = #tpu.core_type<tc>, window_params = [{transform_indices = @transform_0, window_bounds = array<i64: 8, 1024>}, {pipeline_mode = #tpu.pipeline_mode<synchronous>, transform_indices = @transform_1, window_bounds = array<i64: 1024, 128>}, {pipeline_mode = #tpu.pipeline_mode<synchronous>, transform_indices = @transform_2, window_bounds = array<i64: 1, 128>}, {pipeline_mode = #tpu.pipeline_mode<synchronous>, transform_indices = @transform_3, window_bounds = array<i64: 128, 64>}, {pipeline_mode = #tpu.pipeline_mode<synchronous>, transform_indices = @transform_4, window_bounds = array<i64: 1, 64>}, {transform_indices = @transform_5, window_bounds = array<i64: 8, 64>}]} {
    %c0 = arith.constant 0 : index
    %c0_0 = arith.constant 0 : index
    %0 = vector.load %arg1[%c0, %c0_0] : memref<8x1024xf32, #tpu.memory_space<vmem>>, vector<8x1024xf32>
    %1 = arith.truncf %0 : vector<8x1024xf32> to vector<8x1024xbf16>
    %c0_1 = arith.constant 0 : index
    %c0_2 = arith.constant 0 : index
    %2 = vector.load %arg2[%c0_1, %c0_2] : memref<1024x128xbf16, #tpu.memory_space<vmem>>, vector<1024x128xbf16>
    %cst = arith.constant dense<0.000000e+00> : vector<8x128xf32>
    %3 = tpu.matmul %1, %2, %cst {dimension_numbers = #tpu.dot_dimension_numbers<[1], [0], [0], [1], [0, 0, 1, 1], [], []>} : vector<8x1024xbf16>, vector<1024x128xbf16>, vector<8x128xf32> -> vector<8x128xf32>
    %c0_3 = arith.constant 0 : index
    %c0_4 = arith.constant 0 : index
    %4 = vector.load %arg3[%c0_3, %c0_4] : memref<1x128xf32, #tpu.memory_space<vmem>>, vector<1x128xf32>
    %5 = vector.broadcast %4 : vector<1x128xf32> to vector<8x128xf32>
    %6 = arith.addf %3, %5 : vector<8x128xf32>
    %cst_5 = arith.constant 2.000000e+01 : f32
    %7 = vector.broadcast %cst_5 : f32 to vector<8x128xf32>
    %8 = arith.cmpf ogt, %6, %7 : vector<8x128xf32>
    %cst_6 = arith.constant 2.000000e+01 : f32
    %9 = vector.broadcast %cst_6 : f32 to vector<8x128xf32>
    %10 = arith.minimumf %6, %9 : vector<8x128xf32>
    %11 = math.exp %10 : vector<8x128xf32>
    %12 = math.log1p %11 : vector<8x128xf32>
    %13 = arith.select %8, %6, %12 : vector<8x128xi1>, vector<8x128xf32>
    %14 = arith.truncf %13 : vector<8x128xf32> to vector<8x128xbf16>
    %c0_7 = arith.constant 0 : index
    %c0_8 = arith.constant 0 : index
    %15 = vector.load %arg4[%c0_7, %c0_8] : memref<128x64xbf16, #tpu.memory_space<vmem>>, vector<128x64xbf16>
    %cst_9 = arith.constant dense<0.000000e+00> : vector<8x64xf32>
    %16 = tpu.matmul %14, %15, %cst_9 {dimension_numbers = #tpu.dot_dimension_numbers<[1], [0], [0], [1], [0, 0, 1, 1], [], []>} : vector<8x128xbf16>, vector<128x64xbf16>, vector<8x64xf32> -> vector<8x64xf32>
    %c0_10 = arith.constant 0 : index
    %c0_11 = arith.constant 0 : index
    %17 = vector.load %arg5[%c0_10, %c0_11] : memref<1x64xf32, #tpu.memory_space<vmem>>, vector<1x64xf32>
    %18 = vector.broadcast %17 : vector<1x64xf32> to vector<8x64xf32>
    %19 = arith.addf %16, %18 : vector<8x64xf32>
    %20 = tpu.iota {dimensions = array<i32: 1>} : vector<8x64xi32>
    %c32_i32 = arith.constant 32 : i32
    %21 = vector.broadcast %c32_i32 : i32 to vector<8x64xi32>
    %22 = arith.cmpi slt, %20, %21 : vector<8x64xi32>
    %23 = math.exp %19 : vector<8x64xf32>
    %24 = arith.select %22, %19, %23 : vector<8x64xi1>, vector<8x64xf32>
    %c0_12 = arith.constant 0 : index
    %c0_13 = arith.constant 0 : index
    %25 = vector.load %arg6[%c0_12, %c0_13] : memref<8x64xf32, #tpu.memory_space<vmem>>, vector<8x64xf32>
    tpu.vector_store %arg6[%c0_12, %c0_13], %24 {strides = array<i32>} : memref<8x64xf32, #tpu.memory_space<vmem>>, vector<8x64xf32>,
    return
  }
  func.func @transform_0(%arg0: i32) -> (i32, i32) {
    %c0_i32 = arith.constant 0 : i32
    %c0_i32_0 = arith.constant 0 : i32
    return %arg0, %c0_i32 : i32, i32
  }
  func.func @transform_1(%arg0: i32) -> (i32, i32) {
    %c0_i32 = arith.constant 0 : i32
    %c0_i32_0 = arith.constant 0 : i32
    %c0_i32_1 = arith.constant 0 : i32
    return %c0_i32, %c0_i32_0 : i32, i32
  }
  func.func @transform_2(%arg0: i32) -> (i32, i32) {
    %c0_i32 = arith.constant 0 : i32
    %c0_i32_0 = arith.constant 0 : i32
    %c0_i32_1 = arith.constant 0 : i32
    return %c0_i32, %c0_i32_0 : i32, i32
  }
  func.func @transform_3(%arg0: i32) -> (i32, i32) {
    %c0_i32 = arith.constant 0 : i32
    %c0_i32_0 = arith.constant 0 : i32
    %c0_i32_1 = arith.constant 0 : i32
    return %c0_i32, %c0_i32_0 : i32, i32
  }
  func.func @transform_4(%arg0: i32) -> (i32, i32) {
    %c0_i32 = arith.constant 0 : i32
    %c0_i32_0 = arith.constant 0 : i32
    %c0_i32_1 = arith.constant 0 : i32
    return %c0_i32, %c0_i32_0 : i32, i32
  }
  func.func @transform_5(%arg0: i32) -> (i32, i32) {
    %c0_i32 = arith.constant 0 : i32
    %c0_i32_0 = arith.constant 0 : i32
    return %arg0, %c0_i32 : i32, i32
  }
}

</mosaic_0001>

<llo_original>
// kernel: tpu_custom_call.1
$region0: #{tpu_custom_call.1}
  #allocation0 [shape = 'u32[]', space=smem, size = 0x4, offset = 0x4, fixed_abs, tag = 'smem constant byte address 0x4 - core index']
  #allocation1 [shape = 'u32[144,128]{1,0:T(1,128)}', space=vmem, size = 0x12000, scoped, tag = 'internal scratch']
  %s0 = inlined_call_operand.vmem [shape: f32[8,1024], index: 0, kind: input, shape index: {}]
  %s1 = inlined_call_operand.hbm [shape: bf16[1024,128], index: 1, kind: input, shape index: {}]
  %s2 = inlined_call_operand.vmem [shape: f32[1,128], index: 2, kind: input, shape index: {}]
  %s3 = inlined_call_operand.vmem [shape: bf16[128,64], index: 3, kind: input, shape index: {}]
  %s4 = inlined_call_operand.vmem [shape: f32[1,64], index: 4, kind: input, shape index: {}]
  %s5 = inlined_call_operand.hbm [shape: f32[8,64], index: 5, kind: output, shape index: {}]
  %s6 = sld [smem:[#allocation0]]
  $region34: #{tpu_custom_call.1} parent=0
    _
  %s8 = ssub.s32 1, %s6
  %s9 = scalar_select 0, %s8, %s6
  $region1: #{tpu_custom_call.1} parent=0
    #allocation2 [shape = 'u8[262144]{0}', space=vmem, size = 0x40000, scoped, tag = 'input window, operand 1, single buffered']
    #allocation3 [shape = 's32[1]{0}', space=sflag, size = 0x4, scoped, tag = 'scoped memory for tpu_custom_call.1']
    #allocation4 [shape = 's32[1]{0}', space=sflag, size = 0x4, scoped, tag = 'scoped memory for tpu_custom_call.1']
    #allocation5 [shape = 'u8[4096]{0}', space=vmem, size = 0x1000, scoped, tag = 'output window, operand 0, single buffered']
    %10 = vsyncpa [#allocation3], 0
    %11 = vsyncpa [#allocation4], 0
    // Predicated region
    $region2: #{tpu_custom_call.1} parent=1 // pred_check
      _
    $region3: #{tpu_custom_call.1} parent=1 // pred_check_branch
      %13 = sbr.rel (0) target = $region5
    $region4: #{tpu_custom_call.1} parent=1 // pred_region
      _
    $region5: #{tpu_custom_call.1} parent=1 // pred_fallthru
      _
    // Predicated region
    $region6: #{tpu_custom_call.1} parent=1 // pred_check
      _
    $region7: #{tpu_custom_call.1} parent=1 // pred_check_branch
      %15 = sbr.rel (0) target = $region9
    $region8: #{tpu_custom_call.1} parent=1 // pred_region
      %s17 = ssub.s32 8192, 8192
      %18 = vsyncadd [#allocation3], %s17
      %s19 = sshll.u32 [#allocation2], 4
      %s20 = int_to_ptr.vmem [resolvable:$true] %s19
      %25 = dma.hbm_to_vmem [thread:$0]  %s1, 8192, %s20, [#allocation3], 64, 64, 4
    $region9: #{tpu_custom_call.1} parent=1 // pred_fallthru
      _
    // Predicated region
    $region10: #{tpu_custom_call.1} parent=1 // pred_check
      _
    $region11: #{tpu_custom_call.1} parent=1 // pred_check_branch
      %27 = sbr.rel (0) target = $region13
    $region12: #{tpu_custom_call.1} parent=1 // pred_region
      _
    $region13: #{tpu_custom_call.1} parent=1 // pred_fallthru
      _
    // Predicated region
    $region14: #{tpu_custom_call.1} parent=1 // pred_check
      _
    $region15: #{tpu_custom_call.1} parent=1 // pred_check_branch
      %29 = sbr.rel (0) target = $region17
    $region16: #{tpu_custom_call.1} parent=1 // pred_region
      _
    $region17: #{tpu_custom_call.1} parent=1 // pred_fallthru
      _
    // Predicated region
    $region18: #{tpu_custom_call.1} parent=1 // pred_check
      _
    $region19: #{tpu_custom_call.1} parent=1 // pred_check_branch
      %31 = sbr.rel (0) target = $region21
    $region20: #{tpu_custom_call.1} parent=1 // pred_region
      _
    $region21: #{tpu_custom_call.1} parent=1 // pred_fallthru
      _
    // Predicated region
    $region22: #{tpu_custom_call.1} parent=1 // pred_check
      _
    $region23: #{tpu_custom_call.1} parent=1 // pred_check_branch
      %33 = sbr.rel (0) target = $region25
    $region24: #{tpu_custom_call.1} parent=1 // pred_region
      %34 = dma.done [#allocation3], 8192
    $region25: #{tpu_custom_call.1} parent=1 // pred_fallthru
      _
    %v36 = vld [vmem:[%s0] sm:$0xff]
    %v37 = vld [vmem:[%s0 + $0x8] sm:$0xff]
    %v38 = vld [vmem:[%s0 + $0x10] sm:$0xff]
    %v39 = vld [vmem:[%s0 + $0x18] sm:$0xff]
    %v40 = vld [vmem:[%s0 + $0x20] sm:$0xff]
    %v41 = vld [vmem:[%s0 + $0x28] sm:$0xff]
    %v42 = vld [vmem:[%s0 + $0x30] sm:$0xff]
    %v43 = vld [vmem:[%s0 + $0x38] sm:$0xff]
    %v44 = vpack.c.bf16 %v36, %v36
    %v45 = vpack.c.bf16 %v37, %v37
    %v46 = vpack.c.bf16 %v38, %v38
    %v47 = vpack.c.bf16 %v39, %v39
    %v48 = vpack.c.bf16 %v40, %v40
    %v49 = vpack.c.bf16 %v41, %v41
    %v50 = vpack.c.bf16 %v42, %v42
    %v51 = vpack.c.bf16 %v43, %v43
    %v52 = vld [vmem:[#allocation2] sm:$0xf]
    %v53 = vld [vmem:[#allocation2 + $0x4] sm:$0xf]
    %v54 = vld [vmem:[#allocation2 + $0x8] sm:$0xf]
    %v55 = vld [vmem:[#allocation2 + $0xc] sm:$0xf]
    %v56 = vld [vmem:[#allocation2 + $0x10] sm:$0xf]
    %v57 = vld [vmem:[#allocation2 + $0x14] sm:$0xf]
    %v58 = vld [vmem:[#allocation2 + $0x18] sm:$0xf]
    %v59 = vld [vmem:[#allocation2 + $0x1c] sm:$0xf]
    %v60 = vld [vmem:[#allocation2 + $0x20] sm:$0xf]
    %v61 = vld [vmem:[#allocation2 + $0x24] sm:$0xf]
    %v62 = vld [vmem:[#allocation2 + $0x28] sm:$0xf]
    %v63 = vld [vmem:[#allocation2 + $0x2c] sm:$0xf]
    %v64 = vld [vmem:[#allocation2 + $0x30] sm:$0xf]
    %v65 = vld [vmem:[#allocation2 + $0x34] sm:$0xf]
    %v66 = vld [vmem:[#allocation2 + $0x38] sm:$0xf]
    %v67 = vld [vmem:[#allocation2 + $0x3c] sm:$0xf]
    %v68 = vld [vmem:[#allocation2 + $0x40] sm:$0xf]
    %v69 = vld [vmem:[#allocation2 + $0x44] sm:$0xf]
    %v70 = vld [vmem:[#allocation2 + $0x48] sm:$0xf]
    %v71 = vld [vmem:[#allocation2 + $0x4c] sm:$0xf]
    %v72 = vld [vmem:[#allocation2 + $0x50] sm:$0xf]
    %v73 = vld [vmem:[#allocation2 + $0x54] sm:$0xf]
    %v74 = vld [vmem:[#allocation2 + $0x58] sm:$0xf]
    %v75 = vld [vmem:[#allocation2 + $0x5c] sm:$0xf]
    %v76 = vld [vmem:[#allocation2 + $0x60] sm:$0xf]
    %v77 = vld [vmem:[#allocation2 + $0x64] sm:$0xf]
    %v78 = vld [vmem:[#allocation2 + $0x68] sm:$0xf]
    %v79 = vld [vmem:[#allocation2 + $0x6c] sm:$0xf]
    %v80 = vld [vmem:[#allocation2 + $0x70] sm:$0xf]
    %v81 = vld [vmem:[#allocation2 + $0x74] sm:$0xf]
    %v82 = vld [vmem:[#allocation2 + $0x78] sm:$0xf]
    %v83 = vld [vmem:[#allocation2 + $0x7c] sm:$0xf]
    %v84 = vld [vmem:[#allocation2 + $0x80] sm:$0xf]
    %v85 = vld [vmem:[#allocation2 + $0x84] sm:$0xf]
    %v86 = vld [vmem:[#allocation2 + $0x88] sm:$0xf]
    %v87 = vld [vmem:[#allocation2 + $0x8c] sm:$0xf]
    %v88 = vld [vmem:[#allocation2 + $0x90] sm:$0xf]
    %v89 = vld [vmem:[#allocation2 + $0x94] sm:$0xf]
    %v90 = vld [vmem:[#allocation2 + $0x98] sm:$0xf]
    %v91 = vld [vmem:[#allocation2 + $0x9c] sm:$0xf]
    %v92 = vld [vmem:[#allocation2 + $0xa0] sm:$0xf]
    %v93 = vld [vmem:[#allocation2 + $0xa4] sm:$0xf]
    %v94 = vld [vmem:[#allocation2 + $0xa8] sm:$0xf]
    %v95 = vld [vmem:[#allocation2 + $0xac] sm:$0xf]
    %v96 = vld [vmem:[#allocation2 + $0xb0] sm:$0xf]
    %v97 = vld [vmem:[#allocation2 + $0xb4] sm:$0xf]
    %v98 = vld [vmem:[#allocation2 + $0xb8] sm:$0xf]
    %v99 = vld [vmem:[#allocation2 + $0xbc] sm:$0xf]
    %v100 = vld [vmem:[#allocation2 + $0xc0] sm:$0xf]
    %v101 = vld [vmem:[#allocation2 + $0xc4] sm:$0xf]
    %v102 = vld [vmem:[#allocation2 + $0xc8] sm:$0xf]
    %v103 = vld [vmem:[#allocation2 + $0xcc] sm:$0xf]
    %v104 = vld [vmem:[#allocation2 + $0xd0] sm:$0xf]
    %v105 = vld [vmem:[#allocation2 + $0xd4] sm:$0xf]
    %v106 = vld [vmem:[#allocation2 + $0xd8] sm:$0xf]
    %v107 = vld [vmem:[#allocation2 + $0xdc] sm:$0xf]
    %v108 = vld [vmem:[#allocation2 + $0xe0] sm:$0xf]
    %v109 = vld [vmem:[#allocation2 + $0xe4] sm:$0xf]
    %v110 = vld [vmem:[#allocation2 + $0xe8] sm:$0xf]
    %v111 = vld [vmem:[#allocation2 + $0xec] sm:$0xf]
    %v112 = vld [vmem:[#allocation2 + $0xf0] sm:$0xf]
    %v113 = vld [vmem:[#allocation2 + $0xf4] sm:$0xf]
    %v114 = vld [vmem:[#allocation2 + $0xf8] sm:$0xf]
    %v115 = vld [vmem:[#allocation2 + $0xfc] sm:$0xf]
    %v116 = vld [vmem:[#allocation2 + $0x100] sm:$0xf]
    %v117 = vld [vmem:[#allocation2 + $0x104] sm:$0xf]
    %v118 = vld [vmem:[#allocation2 + $0x108] sm:$0xf]
    %v119 = vld [vmem:[#allocation2 + $0x10c] sm:$0xf]
    %v120 = vld [vmem:[#allocation2 + $0x110] sm:$0xf]
    %v121 = vld [vmem:[#allocation2 + $0x114] sm:$0xf]
    %v122 = vld [vmem:[#allocation2 + $0x118] sm:$0xf]
    %v123 = vld [vmem:[#allocation2 + $0x11c] sm:$0xf]
    %v124 = vld [vmem:[#allocation2 + $0x120] sm:$0xf]
    %v125 = vld [vmem:[#allocation2 + $0x124] sm:$0xf]
    %v126 = vld [vmem:[#allocation2 + $0x128] sm:$0xf]
    %v127 = vld [vmem:[#allocation2 + $0x12c] sm:$0xf]
    %v128 = vld [vmem:[#allocation2 + $0x130] sm:$0xf]
    %v129 = vld [vmem:[#allocation2 + $0x134] sm:$0xf]
    %v130 = vld [vmem:[#allocation2 + $0x138] sm:$0xf]
    %v131 = vld [vmem:[#allocation2 + $0x13c] sm:$0xf]
    %v132 = vld [vmem:[#allocation2 + $0x140] sm:$0xf]
    %v133 = vld [vmem:[#allocation2 + $0x144] sm:$0xf]
    %v134 = vld [vmem:[#allocation2 + $0x148] sm:$0xf]
    %v135 = vld [vmem:[#allocation2 + $0x14c] sm:$0xf]
    %v136 = vld [vmem:[#allocation2 + $0x150] sm:$0xf]
    %v137 = vld [vmem:[#allocation2 + $0x154] sm:$0xf]
    %v138 = vld [vmem:[#allocation2 + $0x158] sm:$0xf]
    %v139 = vld [vmem:[#allocation2 + $0x15c] sm:$0xf]
    %v140 = vld [vmem:[#allocation2 + $0x160] sm:$0xf]
    %v141 = vld [vmem:[#allocation2 + $0x164] sm:$0xf]
    %v142 = vld [vmem:[#allocation2 + $0x168] sm:$0xf]
    %v143 = vld [vmem:[#allocation2 + $0x16c] sm:$0xf]
    %v144 = vld [vmem:[#allocation2 + $0x170] sm:$0xf]
    %v145 = vld [vmem:[#allocation2 + $0x174] sm:$0xf]
    %v146 = vld [vmem:[#allocation2 + $0x178] sm:$0xf]
    %v147 = vld [vmem:[#allocation2 + $0x17c] sm:$0xf]
    %v148 = vld [vmem:[#allocation2 + $0x180] sm:$0xf]
    %v149 = vld [vmem:[#allocation2 + $0x184] sm:$0xf]
    %v150 = vld [vmem:[#allocation2 + $0x188] sm:$0xf]
    %v151 = vld [vmem:[#allocation2 + $0x18c] sm:$0xf]
    %v152 = vld [vmem:[#allocation2 + $0x190] sm:$0xf]
    %v153 = vld [vmem:[#allocation2 + $0x194] sm:$0xf]
    %v154 = vld [vmem:[#allocation2 + $0x198] sm:$0xf]
    %v155 = vld [vmem:[#allocation2 + $0x19c] sm:$0xf]
    %v156 = vld [vmem:[#allocation2 + $0x1a0] sm:$0xf]
    %v157 = vld [vmem:[#allocation2 + $0x1a4] sm:$0xf]
    %v158 = vld [vmem:[#allocation2 + $0x1a8] sm:$0xf]
    %v159 = vld [vmem:[#allocation2 + $0x1ac] sm:$0xf]
    %v160 = vld [vmem:[#allocation2 + $0x1b0] sm:$0xf]
    %v161 = vld [vmem:[#allocation2 + $0x1b4] sm:$0xf]
    %v162 = vld [vmem:[#allocation2 + $0x1b8] sm:$0xf]
    %v163 = vld [vmem:[#allocation2 + $0x1bc] sm:$0xf]
    %v164 = vld [vmem:[#allocation2 + $0x1c0] sm:$0xf]
    %v165 = vld [vmem:[#allocation2 + $0x1c4] sm:$0xf]
    %v166 = vld [vmem:[#allocation2 + $0x1c8] sm:$0xf]
    %v167 = vld [vmem:[#allocation2 + $0x1cc] sm:$0xf]
    %v168 = vld [vmem:[#allocation2 + $0x1d0] sm:$0xf]
    %v169 = vld [vmem:[#allocation2 + $0x1d4] sm:$0xf]
    %v170 = vld [vmem:[#allocation2 + $0x1d8] sm:$0xf]
    %v171 = vld [vmem:[#allocation2 + $0x1dc] sm:$0xf]
    %v172 = vld [vmem:[#allocation2 + $0x1e0] sm:$0xf]
    %v173 = vld [vmem:[#allocation2 + $0x1e4] sm:$0xf]
    %v174 = vld [vmem:[#allocation2 + $0x1e8] sm:$0xf]
    %v175 = vld [vmem:[#allocation2 + $0x1ec] sm:$0xf]
    %v176 = vld [vmem:[#allocation2 + $0x1f0] sm:$0xf]
    %v177 = vld [vmem:[#allocation2 + $0x1f4] sm:$0xf]
    %v178 = vld [vmem:[#allocation2 + $0x1f8] sm:$0xf]
    %v179 = vld [vmem:[#allocation2 + $0x1fc] sm:$0xf]
    %v180 = vld [vmem:[%s2] sm:$0x1]
    %v182 = vlaneseq
    %v183 = vshrl.u32 %v182, 7
    %v184 = vsub.s32 0, %v183
    %v185 = vrot.slane %v180, %v184
    %v315 = vunpack.c.l.b16 %v52
    %v316 = vunpack.c.l.b16 %v53
    %v317 = vunpack.c.l.b16 %v54
    %v318 = vunpack.c.l.b16 %v55
    %v319 = vunpack.c.l.b16 %v56
    %v320 = vunpack.c.l.b16 %v57
    %v321 = vunpack.c.l.b16 %v58
    %v322 = vunpack.c.l.b16 %v59
    %v323 = vunpack.c.l.b16 %v60
    %v324 = vunpack.c.l.b16 %v61
    %v325 = vunpack.c.l.b16 %v62
    %v326 = vunpack.c.l.b16 %v63
    %v327 = vunpack.c.l.b16 %v64
    %v328 = vunpack.c.l.b16 %v65
    %v329 = vunpack.c.l.b16 %v66
    %v330 = vunpack.c.l.b16 %v67
    %v331 = vunpack.c.l.b16 %v68
    %v332 = vunpack.c.l.b16 %v69
    %v333 = vunpack.c.l.b16 %v70
    %v334 = vunpack.c.l.b16 %v71
    %v335 = vunpack.c.l.b16 %v72
    %v336 = vunpack.c.l.b16 %v73
    %v337 = vunpack.c.l.b16 %v74
    %v338 = vunpack.c.l.b16 %v75
    %v339 = vunpack.c.l.b16 %v76
    %v340 = vunpack.c.l.b16 %v77
    %v341 = vunpack.c.l.b16 %v78
    %v342 = vunpack.c.l.b16 %v79
    %v343 = vunpack.c.l.b16 %v80
    %v344 = vunpack.c.l.b16 %v81
    %v345 = vunpack.c.l.b16 %v82
    %v346 = vunpack.c.l.b16 %v83
    %v347 = vunpack.c.l.b16 %v84
    %v348 = vunpack.c.l.b16 %v85
    %v349 = vunpack.c.l.b16 %v86
    %v350 = vunpack.c.l.b16 %v87
    %v351 = vunpack.c.l.b16 %v88
    %v352 = vunpack.c.l.b16 %v89
    %v353 = vunpack.c.l.b16 %v90
    %v354 = vunpack.c.l.b16 %v91
    %v355 = vunpack.c.l.b16 %v92
    %v356 = vunpack.c.l.b16 %v93
    %v357 = vunpack.c.l.b16 %v94
    %v358 = vunpack.c.l.b16 %v95
    %v359 = vunpack.c.l.b16 %v96
    %v360 = vunpack.c.l.b16 %v97
    %v361 = vunpack.c.l.b16 %v98
    %v362 = vunpack.c.l.b16 %v99
    %v363 = vunpack.c.l.b16 %v100
    %v364 = vunpack.c.l.b16 %v101
    %v365 = vunpack.c.l.b16 %v102
    %v366 = vunpack.c.l.b16 %v103
    %v367 = vunpack.c.l.b16 %v104
    %v368 = vunpack.c.l.b16 %v105
    %v369 = vunpack.c.l.b16 %v106
    %v370 = vunpack.c.l.b16 %v107
    %v371 = vunpack.c.l.b16 %v108
    %v372 = vunpack.c.l.b16 %v109
    %v373 = vunpack.c.l.b16 %v110
    %v374 = vunpack.c.l.b16 %v111
    %v375 = vunpack.c.l.b16 %v112
    %v376 = vunpack.c.l.b16 %v113
    %v377 = vunpack.c.l.b16 %v114
    %v378 = vunpack.c.l.b16 %v115
    %v379 = vunpack.c.l.b16 %v116
    %v380 = vunpack.c.l.b16 %v117
    %v381 = vunpack.c.l.b16 %v118
    %v382 = vunpack.c.l.b16 %v119
    %v383 = vunpack.c.l.b16 %v120
    %v384 = vunpack.c.l.b16 %v121
    %v385 = vunpack.c.l.b16 %v122
    %v386 = vunpack.c.l.b16 %v123
    %v387 = vunpack.c.l.b16 %v124
    %v388 = vunpack.c.l.b16 %v125
    %v389 = vunpack.c.l.b16 %v126
    %v390 = vunpack.c.l.b16 %v127
    %v391 = vunpack.c.l.b16 %v128
    %v392 = vunpack.c.l.b16 %v129
    %v393 = vunpack.c.l.b16 %v130
    %v394 = vunpack.c.l.b16 %v131
    %v395 = vunpack.c.l.b16 %v132
    %v396 = vunpack.c.l.b16 %v133
    %v397 = vunpack.c.l.b16 %v134
    %v398 = vunpack.c.l.b16 %v135
    %v399 = vunpack.c.l.b16 %v136
    %v400 = vunpack.c.l.b16 %v137
    %v401 = vunpack.c.l.b16 %v138
    %v402 = vunpack.c.l.b16 %v139
    %v403 = vunpack.c.l.b16 %v140
    %v404 = vunpack.c.l.b16 %v141
    %v405 = vunpack.c.l.b16 %v142
    %v406 = vunpack.c.l.b16 %v143
    %v407 = vunpack.c.l.b16 %v144
    %v408 = vunpack.c.l.b16 %v145
    %v409 = vunpack.c.l.b16 %v146
    %v410 = vunpack.c.l.b16 %v147
    %v411 = vunpack.c.l.b16 %v148
    %v412 = vunpack.c.l.b16 %v149
    %v413 = vunpack.c.l.b16 %v150
    %v414 = vunpack.c.l.b16 %v151
    %v415 = vunpack.c.l.b16 %v152
    %v416 = vunpack.c.l.b16 %v153
    %v417 = vunpack.c.l.b16 %v154
    %v418 = vunpack.c.l.b16 %v155
    %v419 = vunpack.c.l.b16 %v156
    %v420 = vunpack.c.l.b16 %v157
    %v421 = vunpack.c.l.b16 %v158
    %v422 = vunpack.c.l.b16 %v159
    %v423 = vunpack.c.l.b16 %v160
    %v424 = vunpack.c.l.b16 %v161
    %v425 = vunpack.c.l.b16 %v162
    %v426 = vunpack.c.l.b16 %v163
    %v427 = vunpack.c.l.b16 %v164
    %v428 = vunpack.c.l.b16 %v165
    %v429 = vunpack.c.l.b16 %v166
    %v430 = vunpack.c.l.b16 %v167
    %v431 = vunpack.c.l.b16 %v168
    %v432 = vunpack.c.l.b16 %v169
    %v433 = vunpack.c.l.b16 %v170
    %v434 = vunpack.c.l.b16 %v171
    %v435 = vunpack.c.l.b16 %v172
    %v436 = vunpack.c.l.b16 %v173
    %v437 = vunpack.c.l.b16 %v174
    %v438 = vunpack.c.l.b16 %v175
    %v439 = vunpack.c.l.b16 %v176
    %v440 = vunpack.c.l.b16 %v177
    %v441 = vunpack.c.l.b16 %v178
    %v442 = vunpack.c.l.b16 %v179
    %v443 = vpack.c.b16 %v316, %v315
    %v444 = vpack.c.b16 %v318, %v317
    %v445 = vpack.c.b16 %v320, %v319
    %v446 = vpack.c.b16 %v322, %v321
    %v447 = vpack.c.b16 %v324, %v323
    %v448 = vpack.c.b16 %v326, %v325
    %v449 = vpack.c.b16 %v328, %v327
    %v450 = vpack.c.b16 %v330, %v329
    %v451 = vpack.c.b16 %v332, %v331
    %v452 = vpack.c.b16 %v334, %v333
    %v453 = vpack.c.b16 %v336, %v335
    %v454 = vpack.c.b16 %v338, %v337
    %v455 = vpack.c.b16 %v340, %v339
    %v456 = vpack.c.b16 %v342, %v341
    %v457 = vpack.c.b16 %v344, %v343
    %v458 = vpack.c.b16 %v346, %v345
    %v459 = vpack.c.b16 %v348, %v347
    %v460 = vpack.c.b16 %v350, %v349
    %v461 = vpack.c.b16 %v352, %v351
    %v462 = vpack.c.b16 %v354, %v353
    %v463 = vpack.c.b16 %v356, %v355
    %v464 = vpack.c.b16 %v358, %v357
    %v465 = vpack.c.b16 %v360, %v359
    %v466 = vpack.c.b16 %v362, %v361
    %v467 = vpack.c.b16 %v364, %v363
    %v468 = vpack.c.b16 %v366, %v365
    %v469 = vpack.c.b16 %v368, %v367
    %v470 = vpack.c.b16 %v370, %v369
    %v471 = vpack.c.b16 %v372, %v371
    %v472 = vpack.c.b16 %v374, %v373
    %v473 = vpack.c.b16 %v376, %v375
    %v474 = vpack.c.b16 %v378, %v377
    %v475 = vpack.c.b16 %v380, %v379
    %v476 = vpack.c.b16 %v382, %v381
    %v477 = vpack.c.b16 %v384, %v383
    %v478 = vpack.c.b16 %v386, %v385
    %v479 = vpack.c.b16 %v388, %v387
    %v480 = vpack.c.b16 %v390, %v389
    %v481 = vpack.c.b16 %v392, %v391
    %v482 = vpack.c.b16 %v394, %v393
    %v483 = vpack.c.b16 %v396, %v395
    %v484 = vpack.c.b16 %v398, %v397
    %v485 = vpack.c.b16 %v400, %v399
    %v486 = vpack.c.b16 %v402, %v401
    %v487 = vpack.c.b16 %v404, %v403
    %v488 = vpack.c.b16 %v406, %v405
    %v489 = vpack.c.b16 %v408, %v407
    %v490 = vpack.c.b16 %v410, %v409
    %v491 = vpack.c.b16 %v412, %v411
    %v492 = vpack.c.b16 %v414, %v413
    %v493 = vpack.c.b16 %v416, %v415
    %v494 = vpack.c.b16 %v418, %v417
    %v495 = vpack.c.b16 %v420, %v419
    %v496 = vpack.c.b16 %v422, %v421
    %v497 = vpack.c.b16 %v424, %v423
    %v498 = vpack.c.b16 %v426, %v425
    %v499 = vpack.c.b16 %v428, %v427
    %v500 = vpack.c.b16 %v430, %v429
    %v501 = vpack.c.b16 %v432, %v431
    %v502 = vpack.c.b16 %v434, %v433
    %v503 = vpack.c.b16 %v436, %v435
    %v504 = vpack.c.b16 %v438, %v437
    %v505 = vpack.c.b16 %v440, %v439
    %v506 = vpack.c.b16 %v442, %v441
    %571 = vmatprep.subr.bf16.mxu0 0
    %572 = vmatpush1.bf16.msra.mxu0 %v443
    %573 = vmatprep.subr.bf16.mxu0 0
    %574 = vmatpush1.bf16.msra.mxu0 %v444
    %575 = vmatprep.subr.bf16.mxu0 0
    %576 = vmatpush1.bf16.msra.mxu0 %v445
    %577 = vmatprep.subr.bf16.mxu0 0
    %578 = vmatpush1.bf16.msra.mxu0 %v446
    %579 = vmatprep.subr.bf16.mxu0 0
    %580 = vmatpush1.bf16.msra.mxu0 %v447
    %581 = vmatprep.subr.bf16.mxu0 0
    %582 = vmatpush1.bf16.msra.mxu0 %v448
    %583 = vmatprep.subr.bf16.mxu0 0
    %584 = vmatpush1.bf16.msra.mxu0 %v449
    %585 = vmatprep.subr.bf16.mxu0 0
    %586 = vmatpush1.bf16.msra.mxu0 %v450
    %587 = vmatprep.subr.bf16.mxu0 0
    %588 = vmatpush1.bf16.msra.mxu0 %v451
    %589 = vmatprep.subr.bf16.mxu0 0
    %590 = vmatpush1.bf16.msra.mxu0 %v452
    %591 = vmatprep.subr.bf16.mxu0 0
    %592 = vmatpush1.bf16.msra.mxu0 %v453
    %593 = vmatprep.subr.bf16.mxu0 0
    %594 = vmatpush1.bf16.msra.mxu0 %v454
    %595 = vmatprep.subr.bf16.mxu0 0
    %596 = vmatpush1.bf16.msra.mxu0 %v455
    %597 = vmatprep.subr.bf16.mxu0 0
    %598 = vmatpush1.bf16.msra.mxu0 %v456
    %599 = vmatprep.subr.bf16.mxu0 0
    %600 = vmatpush1.bf16.msra.mxu0 %v457
    %601 = vmatprep.subr.bf16.mxu0 0
    %602 = vmatpush1.bf16.msra.mxu0 %v458
    %603 = vmatprep.mubr.bf16.mxu0 %v45
    %604 = vmatmul.mubr.bf16.gmra.mrb[0].mxu0 %v44
    %v605 = vpop.f32.mrb[0].mxu0
    %v606 = vadd.f32 %v185, %v605
    %v607 = vpop.f32.mrb[0].mxu0
    %v608 = vpop.f32.mrb[0].mxu0
    %v609 = vpop.f32.mrb[0].mxu0
    %610 = vdwg.mxu0
    %611 = vmatprep.subr.bf16.mxu0 0
    %612 = vmatpush1.bf16.msra.mxu0 %v459
    %613 = vmatprep.subr.bf16.mxu0 0
    %614 = vmatpush1.bf16.msra.mxu0 %v460
    %615 = vmatprep.subr.bf16.mxu0 0
    %616 = vmatpush1.bf16.msra.mxu0 %v461
    %617 = vmatprep.subr.bf16.mxu0 0
    %618 = vmatpush1.bf16.msra.mxu0 %v462
    %619 = vmatprep.subr.bf16.mxu0 0
    %620 = vmatpush1.bf16.msra.mxu0 %v463
    %621 = vmatprep.subr.bf16.mxu0 0
    %622 = vmatpush1.bf16.msra.mxu0 %v464
    %623 = vmatprep.subr.bf16.mxu0 0
    %624 = vmatpush1.bf16.msra.mxu0 %v465
    %625 = vmatprep.subr.bf16.mxu0 0
    %626 = vmatpush1.bf16.msra.mxu0 %v466
    %627 = vmatprep.subr.bf16.mxu0 0
    %628 = vmatpush1.bf16.msra.mxu0 %v467
    %629 = vmatprep.subr.bf16.mxu0 0
    %630 = vmatpush1.bf16.msra.mxu0 %v468
    %631 = vmatprep.subr.bf16.mxu0 0
    %632 = vmatpush1.bf16.msra.mxu0 %v469
    %633 = vmatprep.subr.bf16.mxu0 0
    %634 = vmatpush1.bf16.msra.mxu0 %v470
    %635 = vmatprep.subr.bf16.mxu0 0
    %636 = vmatpush1.bf16.msra.mxu0 %v471
    %637 = vmatprep.subr.bf16.mxu0 0
    %638 = vmatpush1.bf16.msra.mxu0 %v472
    %639 = vmatprep.subr.bf16.mxu0 0
    %640 = vmatpush1.bf16.msra.mxu0 %v473
    %641 = vmatprep.subr.bf16.mxu0 0
    %642 = vmatpush1.bf16.msra.mxu0 %v474
    %643 = vmatprep.mubr.bf16.mxu0 %v47
    %644 = vmatmul.mubr.bf16.gmra.mrb[0].mxu0 %v46
    %v645 = vpop.f32.mrb[0].mxu0
    %v646 = vadd.f32 %v606, %v645
    %v647 = vpop.f32.mrb[0].mxu0
    %v648 = vpop.f32.mrb[0].mxu0
    %v649 = vpop.f32.mrb[0].mxu0
    %650 = vdwg.mxu0
    %651 = vmatprep.subr.bf16.mxu0 0
    %652 = vmatpush1.bf16.msra.mxu0 %v475
    %653 = vmatprep.subr.bf16.mxu0 0
    %654 = vmatpush1.bf16.msra.mxu0 %v476
    %655 = vmatprep.subr.bf16.mxu0 0
    %656 = vmatpush1.bf16.msra.mxu0 %v477
    %657 = vmatprep.subr.bf16.mxu0 0
    %658 = vmatpush1.bf16.msra.mxu0 %v478
    %659 = vmatprep.subr.bf16.mxu0 0
    %660 = vmatpush1.bf16.msra.mxu0 %v479
    %661 = vmatprep.subr.bf16.mxu0 0
    %662 = vmatpush1.bf16.msra.mxu0 %v480
    %663 = vmatprep.subr.bf16.mxu0 0
    %664 = vmatpush1.bf16.msra.mxu0 %v481
    %665 = vmatprep.subr.bf16.mxu0 0
    %666 = vmatpush1.bf16.msra.mxu0 %v482
    %667 = vmatprep.subr.bf16.mxu0 0
    %668 = vmatpush1.bf16.msra.mxu0 %v483
    %669 = vmatprep.subr.bf16.mxu0 0
    %670 = vmatpush1.bf16.msra.mxu0 %v484
    %671 = vmatprep.subr.bf16.mxu0 0
    %672 = vmatpush1.bf16.msra.mxu0 %v485
    %673 = vmatprep.subr.bf16.mxu0 0
    %674 = vmatpush1.bf16.msra.mxu0 %v486
    %675 = vmatprep.subr.bf16.mxu0 0
    %676 = vmatpush1.bf16.msra.mxu0 %v487
    %677 = vmatprep.subr.bf16.mxu0 0
    %678 = vmatpush1.bf16.msra.mxu0 %v488
    %679 = vmatprep.subr.bf16.mxu0 0
    %680 = vmatpush1.bf16.msra.mxu0 %v489
    %681 = vmatprep.subr.bf16.mxu0 0
    %682 = vmatpush1.bf16.msra.mxu0 %v490
    %683 = vmatprep.mubr.bf16.mxu0 %v49
    %684 = vmatmul.mubr.bf16.gmra.mrb[0].mxu0 %v48
    %v685 = vpop.f32.mrb[0].mxu0
    %v686 = vadd.f32 %v646, %v685
    %v687 = vpop.f32.mrb[0].mxu0
    %v688 = vpop.f32.mrb[0].mxu0
    %v689 = vpop.f32.mrb[0].mxu0
    %690 = vdwg.mxu0
    %691 = vmatprep.subr.bf16.mxu0 0
    %692 = vmatpush1.bf16.msra.mxu0 %v491
    %693 = vmatprep.subr.bf16.mxu0 0
    %694 = vmatpush1.bf16.msra.mxu0 %v492
    %695 = vmatprep.subr.bf16.mxu0 0
    %696 = vmatpush1.bf16.msra.mxu0 %v493
    %697 = vmatprep.subr.bf16.mxu0 0
    %698 = vmatpush1.bf16.msra.mxu0 %v494
    %699 = vmatprep.subr.bf16.mxu0 0
    %700 = vmatpush1.bf16.msra.mxu0 %v495
    %701 = vmatprep.subr.bf16.mxu0 0
    %702 = vmatpush1.bf16.msra.mxu0 %v496
    %703 = vmatprep.subr.bf16.mxu0 0
    %704 = vmatpush1.bf16.msra.mxu0 %v497
    %705 = vmatprep.subr.bf16.mxu0 0
    %706 = vmatpush1.bf16.msra.mxu0 %v498
    %707 = vmatprep.subr.bf16.mxu0 0
    %708 = vmatpush1.bf16.msra.mxu0 %v499
    %709 = vmatprep.subr.bf16.mxu0 0
    %710 = vmatpush1.bf16.msra.mxu0 %v500
    %711 = vmatprep.subr.bf16.mxu0 0
    %712 = vmatpush1.bf16.msra.mxu0 %v501
    %713 = vmatprep.subr.bf16.mxu0 0
    %714 = vmatpush1.bf16.msra.mxu0 %v502
    %715 = vmatprep.subr.bf16.mxu0 0
    %716 = vmatpush1.bf16.msra.mxu0 %v503
    %717 = vmatprep.subr.bf16.mxu0 0
    %718 = vmatpush1.bf16.msra.mxu0 %v504
    %719 = vmatprep.subr.bf16.mxu0 0
    %720 = vmatpush1.bf16.msra.mxu0 %v505
    %721 = vmatprep.subr.bf16.mxu0 0
    %722 = vmatpush1.bf16.msra.mxu0 %v506
    %723 = vmatprep.mubr.bf16.mxu0 %v51
    %724 = vmatmul.mubr.bf16.gmra.mrb[0].mxu0 %v50
    %v725 = vpop.f32.mrb[0].mxu0
    %v726 = vadd.f32 %v686, %v725
    %v727 = vpop.f32.mrb[0].mxu0
    %v728 = vpop.f32.mrb[0].mxu0
    %v729 = vpop.f32.mrb[0].mxu0
    %730 = vdwg.mxu0
    %vm731 = vcmp.gt.f32.partialorder %v726, 20.0
    %v732 = vmin.f32 %v726, 20.0
    %v733 = vmul.f32 %v732, 1.442695
    %v734 = vpow.pop %v733
    %v735 = vadd.f32 %v734, 1.0
    %v736 = vlog2.pop %v735
    %v737 = vmul.f32 %v736, 0.6931472
    %v738 = vmul.f32 -0.5, %v734
    %v739 = vadd.f32 %v738, 1.0
    %v740 = vmul.f32 %v739, %v734
    %v741 = vand.u32 2147483647, %v734
    %vm742 = vcmp.lt.f32.partialorder %v741, 0.0004427343
    %v743 = vsel %vm742, %v740, %v737
    %v744 = vsel %vm731, %v726, %v743
    %v745 = vpack.c.bf16 %v744, %v744
    %v746 = vld [vmem:[%s3] sm:$0xf]
    %v747 = vld [vmem:[%s3 + $0x4] sm:$0xf]
    %v748 = vld [vmem:[%s3 + $0x8] sm:$0xf]
    %v749 = vld [vmem:[%s3 + $0xc] sm:$0xf]
    %v750 = vld [vmem:[%s3 + $0x10] sm:$0xf]
    %v751 = vld [vmem:[%s3 + $0x14] sm:$0xf]
    %v752 = vld [vmem:[%s3 + $0x18] sm:$0xf]
    %v753 = vld [vmem:[%s3 + $0x1c] sm:$0xf]
    %v754 = vld [vmem:[%s3 + $0x20] sm:$0xf]
    %v755 = vld [vmem:[%s3 + $0x24] sm:$0xf]
    %v756 = vld [vmem:[%s3 + $0x28] sm:$0xf]
    %v757 = vld [vmem:[%s3 + $0x2c] sm:$0xf]
    %v758 = vld [vmem:[%s3 + $0x30] sm:$0xf]
    %v759 = vld [vmem:[%s3 + $0x34] sm:$0xf]
    %v760 = vld [vmem:[%s3 + $0x38] sm:$0xf]
    %v761 = vld [vmem:[%s3 + $0x3c] sm:$0xf]
    %v762 = vld [vmem:[%s4] sm:$0x1]
    %v764 = vlaneseq
    %v765 = vshrl.u32 %v764, 7
    %v766 = vsub.s32 0, %v765
    %v767 = vrot.slane %v762, %v766
    %v785 = vunpack.c.l.b16 %v746
    %v786 = vunpack.c.l.b16 %v747
    %v787 = vunpack.c.l.b16 %v748
    %v788 = vunpack.c.l.b16 %v749
    %v789 = vunpack.c.l.b16 %v750
    %v790 = vunpack.c.l.b16 %v751
    %v791 = vunpack.c.l.b16 %v752
    %v792 = vunpack.c.l.b16 %v753
    %v793 = vunpack.c.l.b16 %v754
    %v794 = vunpack.c.l.b16 %v755
    %v795 = vunpack.c.l.b16 %v756
    %v796 = vunpack.c.l.b16 %v757
    %v797 = vunpack.c.l.b16 %v758
    %v798 = vunpack.c.l.b16 %v759
    %v799 = vunpack.c.l.b16 %v760
    %v800 = vunpack.c.l.b16 %v761
    %v801 = vpack.c.b16 %v786, %v785
    %v802 = vpack.c.b16 %v788, %v787
    %v803 = vpack.c.b16 %v790, %v789
    %v804 = vpack.c.b16 %v792, %v791
    %v805 = vpack.c.b16 %v794, %v793
    %v806 = vpack.c.b16 %v796, %v795
    %v807 = vpack.c.b16 %v798, %v797
    %v808 = vpack.c.b16 %v800, %v799
    %817 = vmatprep.subr.bf16.mxu0 0
    %818 = vmatpush1.bf16.msra.mxu0 %v801
    %819 = vmatprep.subr.bf16.mxu0 0
    %820 = vmatpush1.bf16.msra.mxu0 %v802
    %821 = vmatprep.subr.bf16.mxu0 0
    %822 = vmatpush1.bf16.msra.mxu0 %v803
    %823 = vmatprep.subr.bf16.mxu0 0
    %824 = vmatpush1.bf16.msra.mxu0 %v804
    %825 = vmatprep.subr.bf16.mxu0 0
    %826 = vmatpush1.bf16.msra.mxu0 %v805
    %827 = vmatprep.subr.bf16.mxu0 0
    %828 = vmatpush1.bf16.msra.mxu0 %v806
    %829 = vmatprep.subr.bf16.mxu0 0
    %830 = vmatpush1.bf16.msra.mxu0 %v807
    %831 = vmatprep.subr.bf16.mxu0 0
    %832 = vmatpush1.bf16.msra.mxu0 %v808
    %833 = vmatprep.subr.bf16.mxu0 0
    %834 = vmatpush1.bf16.msra.mxu0 0
    %835 = vmatprep.subr.bf16.mxu0 0
    %836 = vmatpush1.bf16.msra.mxu0 0
    %837 = vmatprep.subr.bf16.mxu0 0
    %838 = vmatpush1.bf16.msra.mxu0 0
    %839 = vmatprep.subr.bf16.mxu0 0
    %840 = vmatpush1.bf16.msra.mxu0 0
    %841 = vmatprep.subr.bf16.mxu0 0
    %842 = vmatpush1.bf16.msra.mxu0 0
    %843 = vmatprep.subr.bf16.mxu0 0
    %844 = vmatpush1.bf16.msra.mxu0 0
    %845 = vmatprep.subr.bf16.mxu0 0
    %846 = vmatpush1.bf16.msra.mxu0 0
    %847 = vmatprep.subr.bf16.mxu0 0
    %848 = vmatpush1.bf16.msra.mxu0 0
    %849 = vmatprep.mubr.bf16.mxu0 0
    %850 = vmatmul.mubr.bf16.gmra.mrb[0].mxu0 %v745
    %v851 = vpop.f32.mrb[0].mxu0
    %v852 = vadd.f32 %v767, %v851
    %v853 = vpop.f32.mrb[0].mxu0
    %v854 = vpop.f32.mrb[0].mxu0
    %v855 = vpop.f32.mrb[0].mxu0
    %856 = vdwg.mxu0
    %v857 = vlaneseq
    %v858 = vand.u32 %v857, 127
    %vm859 = vcmp.lt.s32.totalorder %v858, 32
    %v860 = vmul.f32 %v852, 1.442695
    %v861 = vpow.pop %v860
    %v862 = vsel %vm859, %v852, %v861
    %vm863 = vcmask 523264
    %864 = vst.msk [vmem:[#allocation5] sm:$0xff] %vm863, %v862
    // Predicated region
    $region26: #{tpu_custom_call.1} parent=1 // pred_check
      _
    $region27: #{tpu_custom_call.1} parent=1 // pred_check_branch
      %866 = sbr.rel (0) target = $region29
    $region28: #{tpu_custom_call.1} parent=1 // pred_region
      %s868 = ssub.s32 128, 128
      %869 = vsyncadd [#allocation4], %s868
      %s871 = sshll.u32 [#allocation5], 4
      %s872 = int_to_ptr.vmem [resolvable:$true] %s871
      %874 = dma.vmem_to_hbm [thread:$0]  %s872, 128, %s5, [#allocation4]
    $region29: #{tpu_custom_call.1} parent=1 // pred_fallthru
      _
    // Predicated region
    $region30: #{tpu_custom_call.1} parent=1 // pred_check
      _
    $region31: #{tpu_custom_call.1} parent=1 // pred_check_branch
      %876 = sbr.rel (0) target = $region33
    $region32: #{tpu_custom_call.1} parent=1 // pred_region
      %877 = dma.done [#allocation4], 128
    $region33: #{tpu_custom_call.1} parent=1 // pred_fallthru
      _
    %878 = vsyncpa [#allocation3], 1
    %879 = vsyncpa [#allocation4], 1

</llo_original>
